<compile_context>
chip_gen: v7x
topology: tpu7x:2x2x1
jax: 0.10.0
libtpu: 0.0.40
codegen_flags: <defaults>
</compile_context>

<pallas_src>
import jax
import jax.numpy as jnp
from jax.experimental import pallas as pl
from jax.experimental.pallas import tpu as pltpu


def _bcast_mul_kernel(x_ref, s_ref, o_ref):
    # x_ref / o_ref: (c_tile, HW) block of the activation.
    # s_ref: full (C, 1) per-channel scale, resident in VMEM across all steps.
    c_tile = x_ref.shape[0]
    start = pl.multiple_of(pl.program_id(0) * c_tile, c_tile)
    o_ref[...] = x_ref[...] * s_ref[pl.ds(start, c_tile), :]


def _pick_c_tile(c):
    # Prefer a multiple-of-16 tile that divides C and yields a >=2-step grid
    # (so the pipeline can overlap DMA); fall back to the whole channel axis.
    for t in (32, 48, 16, 8):
        if c % t == 0 and c // t >= 2:
            return t
    return c


def channel_scale_mul(x, scale):
    """x: (N, C, H, W), scale: (N, C, 1, 1). Returns x * scale (NCHW)."""
    n, c, h, w = x.shape
    assert scale.shape == (n, c, 1, 1)

    nc = n * c
    hw = h * w
    x2d = x.reshape(nc, hw)      # (N*C, HW): channels -> sublanes, spatial -> lanes
    s2d = scale.reshape(nc, 1)   # (N*C, 1):  per-channel scale

    c_tile = _pick_c_tile(nc)
    grid = (nc // c_tile,)

    out2d = pl.pallas_call(
        _bcast_mul_kernel,
        out_shape=jax.ShapeDtypeStruct((nc, hw), x.dtype),
        grid_spec=pl.GridSpec(
            grid=grid,
            in_specs=[
                pl.BlockSpec((c_tile, hw), lambda i: (i, 0)),
                # Constant block index -> fetched once, stays resident in VMEM.
                pl.BlockSpec((nc, 1), lambda i: (0, 0)),
            ],
            out_specs=pl.BlockSpec((c_tile, hw), lambda i: (i, 0)),
        ),
        compiler_params=pltpu.CompilerParams(
            dimension_semantics=("parallel",),
        ),
    )(x2d, s2d)

    return out2d.reshape(n, c, h, w)


if __name__ == "__main__":
    key = jax.random.PRNGKey(0)
    k1, k2 = jax.random.split(key)

    # Shapes from the PyTorch module (small enough to run directly).
    x21 = jax.random.normal(k1, (1, 96, 56, 56), dtype=jnp.float32)
    x26 = jax.random.normal(k2, (1, 96, 1, 1), dtype=jnp.float32)

    out = jax.block_until_ready(channel_scale_mul(x21, x26))

    # Reference check in plain JAX (same broadcasting semantics as PyTorch mul).
    ref = x21 * x26
    assert out.shape == (1, 96, 56, 56)
    assert jnp.allclose(out, ref, atol=1e-6, rtol=1e-6)

    print("KERNEL_OK")
</pallas_src>

<mosaic_0001>
module attributes {stable_mosaic.version = 11 : i64} {
  func.func @_bcast_mul_kernel(%arg0: i32, %arg1: memref<32x3136xf32, #tpu.memory_space<vmem>>, %arg2: memref<96x1xf32, #tpu.memory_space<vmem>>, %arg3: memref<32x3136xf32, #tpu.memory_space<vmem>>) attributes {dimension_semantics = [#tpu.dimension_semantics<parallel>], iteration_bounds = array<i64: 3>, scalar_prefetch = 0 : i64, scratch_operands = 0 : i64, tpu.core_type = #tpu.core_type<tc>, window_params = [{transform_indices = @transform_0, window_bounds = array<i64: 32, 3136>}, {pipeline_mode = #tpu.pipeline_mode<synchronous>, transform_indices = @transform_1, window_bounds = array<i64: 96, 1>}, {transform_indices = @transform_2, window_bounds = array<i64: 32, 3136>}]} {
    %c32_i32 = arith.constant 32 : i32
    %0 = arith.muli %arg0, %c32_i32 : i32
    %1 = tpu.assume_multiple %0, 32 : i32
    %c0 = arith.constant 0 : index
    %c0_0 = arith.constant 0 : index
    %2 = vector.load %arg1[%c0, %c0_0] : memref<32x3136xf32, #tpu.memory_space<vmem>>, vector<32x3136xf32>
    %3 = arith.index_cast %1 : i32 to index
    %c0_1 = arith.constant 0 : index
    %4 = vector.load %arg2[%3, %c0_1] : memref<96x1xf32, #tpu.memory_space<vmem>>, vector<32x1xf32>
    %5 = vector.broadcast %4 : vector<32x1xf32> to vector<32x3136xf32>
    %6 = arith.mulf %2, %5 : vector<32x3136xf32>
    %c0_2 = arith.constant 0 : index
    %c0_3 = arith.constant 0 : index
    %7 = vector.load %arg3[%c0_2, %c0_3] : memref<32x3136xf32, #tpu.memory_space<vmem>>, vector<32x3136xf32>
    tpu.vector_store %arg3[%c0_2, %c0_3], %6 {strides = array<i32>} : memref<32x3136xf32, #tpu.memory_space<vmem>>, vector<32x3136xf32>,
    return
  }
  func.func @transform_0(%arg0: i32) -> (i32, i32) {
    %c0_i32 = arith.constant 0 : i32
    %c0_i32_0 = arith.constant 0 : i32
    return %arg0, %c0_i32 : i32, i32
  }
  func.func @transform_1(%arg0: i32) -> (i32, i32) {
    %c0_i32 = arith.constant 0 : i32
    %c0_i32_0 = arith.constant 0 : i32
    %c0_i32_1 = arith.constant 0 : i32
    return %c0_i32, %c0_i32_0 : i32, i32
  }
  func.func @transform_2(%arg0: i32) -> (i32, i32) {
    %c0_i32 = arith.constant 0 : i32
    %c0_i32_0 = arith.constant 0 : i32
    return %arg0, %c0_i32 : i32, i32
  }
}

</mosaic_0001>

<llo_original>
// kernel: tpu_custom_call.1
$region0: #{tpu_custom_call.1}
  #allocation0 [shape = 'u32[]', space=smem, size = 0x4, offset = 0x4, fixed_abs, tag = 'smem constant byte address 0x4 - core index']
  #allocation1 [shape = 'u32[144,128]{1,0:T(1,128)}', space=vmem, size = 0x12000, scoped, tag = 'internal scratch']
  %s0 = inlined_call_operand.hbm [shape: f32[96,3136], index: 0, kind: input, shape index: {}]
  %s1 = inlined_call_operand.vmem [shape: f32[96,1], index: 1, kind: input, shape index: {}]
  %s2 = inlined_call_operand.hbm [shape: f32[96,3136], index: 2, kind: output, shape index: {}]
  %s3 = sld [smem:[#allocation0]]
  $region45: #{tpu_custom_call.1} parent=0
    _
  %s5 = ssub.s32 1, %s3
  %s6 = scalar_select 0, %s5, %s3
  $region1: #{tpu_custom_call.1} parent=0
    #allocation2 [shape = 'u8[819200]{0}', space=vmem, size = 0xc8000, scoped, tag = 'input window, operand 0']
    #allocation3 [shape = 's32[2]{0}', space=sflag, size = 0x8, scoped, tag = 'scoped memory for tpu_custom_call.1']
    #allocation4 [shape = 's32[2]{0}', space=sflag, size = 0x8, scoped, tag = 'scoped memory for tpu_custom_call.1']
    #allocation5 [shape = 'u8[819200]{0}', space=vmem, size = 0xc8000, scoped, tag = 'output window, operand 0']
    %7 = vsyncpa [#allocation3], 0
    %s8 = scalar_lea.sflag [#allocation3], 1
    %9 = vsyncpa %s8, 0
    %10 = vsyncpa [#allocation4], 0
    %s11 = scalar_lea.sflag [#allocation4], 1
    %12 = vsyncpa %s11, 0
    loop: start=0, step=1, limit=5
    $region2: #{tpu_custom_call.1} parent=1 // loop_pre_header
      _
    $region3: #{tpu_custom_call.1} parent=1 // loop_header
      %s14 = sphi 0, %s18
      %p15 = scmp.ge.s32.totalorder %s14, 5
      %s24 = sphi 0, %s26
      %s27 = sphi 0, %s24
      %s28 = sphi 0, %s27
      %s44 = sphi 0, %s28
      %s48 = sphi 0, %s48
      %s50 = sphi 0, %s48
      %s51 = sphi 0, %s50
      %s65 = sphi 0, %s51
      %s71 = sphi 0, %s73
      %s74 = sphi 0, %s71
      %s75 = sphi 0, %s74
      %s91 = sphi 0, %s75
    $region4: #{tpu_custom_call.1} parent=1 // loop_header_branch
      %17 = sbr.rel (%p15) target = $region8
    $region5: #{tpu_custom_call.1} parent=1 // loop_body
      %s19 = ssub.s32 %s14, 1
      %s20 = ssub.s32 %s14, 2
      %s21 = sadd.s32 %s14, 1
      %s22 = ssub.s32 %s14, %s21
      %p23 = scmp.eq.s32.totalorder %s22, 0
      %s25 = sadd.s32 %s24, 1
      %s26 = scalar_select %p23, %s24, %s25
      %p29 = pneg %p23
      %p30 = scmp.eq.s32.totalorder %s14, 2
      %p31 = por %p29, %p30
      %p32 = scmp.ne.s32.totalorder %s24, %s27
      %p33 = scmp.eq.s32.totalorder %s14, 0
      %p34 = por %p32, %p33
      %p35 = scmp.ne.s32.totalorder %s24, %s27
      %p36 = scmp.eq.s32.totalorder %s19, 2
      %p37 = por %p35, %p36
      %p38 = scmp.ne.s32.totalorder %s27, %s28
      %p39 = scmp.eq.s32.totalorder %s19, 0
      %p40 = por %p38, %p39
      %p41 = scmp.ne.s32.totalorder %s27, %s28
      %p42 = scmp.eq.s32.totalorder %s20, 2
      %p43 = por %p41, %p42
      %p45 = scmp.ne.s32.totalorder %s28, %s44
      %p46 = scmp.eq.s32.totalorder %s20, 0
      %p47 = por %p45, %p46
      %s49 = sadd.s32 %s48, 1
      %p52 = scmp.eq.s32.totalorder %s14, 2
      %p53 = scmp.ne.s32.totalorder %s48, %s50
      %p54 = scmp.eq.s32.totalorder %s14, 0
      %p55 = por %p53, %p54
      %p56 = scmp.ne.s32.totalorder %s48, %s50
      %p57 = scmp.eq.s32.totalorder %s19, 2
      %p58 = por %p56, %p57
      %p59 = scmp.ne.s32.totalorder %s50, %s51
      %p60 = scmp.eq.s32.totalorder %s19, 0
      %p61 = por %p59, %p60
      %p62 = scmp.ne.s32.totalorder %s50, %s51
      %p63 = scmp.eq.s32.totalorder %s20, 2
      %p64 = por %p62, %p63
      %p66 = scmp.ne.s32.totalorder %s51, %s65
      %p67 = scmp.eq.s32.totalorder %s20, 0
      %p68 = por %p66, %p67
      %s69 = ssub.s32 %s14, %s21
      %p70 = scmp.eq.s32.totalorder %s69, 0
      %s72 = sadd.s32 %s71, 1
      %s73 = scalar_select %p70, %s71, %s72
      %p76 = pneg %p70
      %p77 = scmp.eq.s32.totalorder %s14, 2
      %p78 = por %p76, %p77
      %p79 = scmp.ne.s32.totalorder %s71, %s74
      %p80 = scmp.eq.s32.totalorder %s14, 0
      %p81 = por %p79, %p80
      %p82 = scmp.ne.s32.totalorder %s71, %s74
      %p83 = scmp.eq.s32.totalorder %s19, 2
      %p84 = por %p82, %p83
      %p85 = scmp.ne.s32.totalorder %s74, %s75
      %p86 = scmp.eq.s32.totalorder %s19, 0
      %p87 = por %p85, %p86
      %p88 = scmp.ne.s32.totalorder %s74, %s75
      %p89 = scmp.eq.s32.totalorder %s20, 2
      %p90 = por %p88, %p89
      %p92 = scmp.ne.s32.totalorder %s75, %s91
      %p93 = scmp.eq.s32.totalorder %s20, 0
      %p94 = por %p92, %p93
      %p95 = scmp.le.s32.totalorder 1, %s14
      %p96 = scmp.lt.s32.totalorder %s14, 4
      %p97 = pnand %p95, %p96
      %p98 = pneg %p97
      // Predicated region
      $region9: #{tpu_custom_call.1} parent=5 // pred_check
        _
      $region10: #{tpu_custom_call.1} parent=5 // pred_check_branch
        %100 = sbr.rel (%p97) target = $region12
      $region11: #{tpu_custom_call.1} parent=5 // pred_region
        %s101 = ssub.s32 %s14, 1
        // Predicated region
        $region13: #{tpu_custom_call.1} parent=11 // pred_check
          %p102 = pneg %p61
        $region14: #{tpu_custom_call.1} parent=11 // pred_check_branch
          %104 = sbr.rel (%p102) target = $region16
        $region15: #{tpu_custom_call.1} parent=11 // pred_region
          _
        $region16: #{tpu_custom_call.1} parent=11 // pred_fallthru
          _
      $region12: #{tpu_custom_call.1} parent=5 // pred_fallthru
        _
      %p105 = scmp.lt.s32.totalorder %s14, 3
      // Predicated region
      $region17: #{tpu_custom_call.1} parent=5 // pred_check
        %p106 = pneg %p105
      $region18: #{tpu_custom_call.1} parent=5 // pred_check_branch
        %108 = sbr.rel (%p106) target = $region20
      $region19: #{tpu_custom_call.1} parent=5 // pred_region
        // Predicated region
        $region21: #{tpu_custom_call.1} parent=19 // pred_check
          %p109 = pneg %p34
        $region22: #{tpu_custom_call.1} parent=19 // pred_check_branch
          %111 = sbr.rel (%p109) target = $region24
        $region23: #{tpu_custom_call.1} parent=19 // pred_region
          %s112 = sand.u32 %s24, 1
          %s113 = scalar_lea.sflag [#allocation3], %s112
          %s114 = sand.u32 %s24, 1
          %s115 = smul.addr %s114, 800
          %s116 = scalar_lea.vmem [#allocation2], %s115
          %s117 = smul.u32 4, %s14
          %s119 = ssub.s32 12800, 12800
          %120 = vsyncadd %s113, %s119
          %s121 = smul.addr %s117, 25
          %s122 = smul.addr %s121, 128
          %s123 = scalar_lea.hbm %s0, %s122
          %s124 = sshll.u32 %s116, 4
          %s125 = int_to_ptr.vmem [resolvable:$true] %s124
          %130 = dma.hbm_to_vmem [thread:$0]  %s123, 12800, %s125, %s113, 3200, 3200, 200
        $region24: #{tpu_custom_call.1} parent=19 // pred_fallthru
          _
      $region20: #{tpu_custom_call.1} parent=5 // pred_fallthru
        _
      %p131 = scmp.le.s32.totalorder 1, %s14
      %p132 = scmp.lt.s32.totalorder %s14, 4
      %p133 = pnand %p131, %p132
      %p134 = pneg %p133
      // Predicated region
      $region25: #{tpu_custom_call.1} parent=5 // pred_check
        _
      $region26: #{tpu_custom_call.1} parent=5 // pred_check_branch
        %136 = sbr.rel (%p133) target = $region28
      $region27: #{tpu_custom_call.1} parent=5 // pred_region
        %s137 = ssub.s32 %s14, 1
        %s138 = sand.u32 %s27, 1
        %s139 = scalar_lea.sflag [#allocation3], %s138
        %s140 = sand.u32 %s27, 1
        %s141 = smul.addr %s140, 800
        %s142 = scalar_lea.vmem [#allocation2], %s141
        // Predicated region
        $region29: #{tpu_custom_call.1} parent=27 // pred_check
          %p143 = pneg %p40
        $region30: #{tpu_custom_call.1} parent=27 // pred_check_branch
          %145 = sbr.rel (%p143) target = $region32
        $region31: #{tpu_custom_call.1} parent=27 // pred_region
          %146 = dma.done %s139, 12800
        $region32: #{tpu_custom_call.1} parent=27 // pred_fallthru
          _
        %s147 = sand.u32 %s27, 1
        %s148 = scalar_lea.sflag [#allocation3], %s147
        %s149 = sand.u32 %s27, 1
        %s150 = smul.addr %s149, 800
        %s151 = scalar_lea.vmem [#allocation2], %s150
        %p152 = pneg %p40
        %p153 = pneg %p37
        %p154 = pneg %p61
        %p155 = pneg %p58
        %p156 = pneg %p87
        %p157 = pneg %p84
        %s158 = sand.u32 %s74, 1
        %s159 = scalar_lea.sflag [#allocation4], %s158
        %s160 = sand.u32 %s74, 1
        %s161 = smul.addr %s160, 800
        %s162 = scalar_lea.vmem [#allocation5], %s161
        %s163 = smul.u32 4, %s19
        %s164 = smul.u32 4, %s19
        %s165 = smul.u32 %s19, 32
        %v166 = vld [vmem:[%s142] sm:$0xff]
        %v167 = vld [vmem:[%s142 + $0x8] sm:$0xff]
        %v168 = vld [vmem:[%s142 + $0x10] sm:$0xff]
        %v169 = vld [vmem:[%s142 + $0x18] sm:$0xff]
        %v170 = vld [vmem:[%s142 + $0x20] sm:$0xff]
        %v171 = vld [vmem:[%s142 + $0x28] sm:$0xff]
        %v172 = vld [vmem:[%s142 + $0x30] sm:$0xff]
        %v173 = vld [vmem:[%s142 + $0x38] sm:$0xff]
        %v174 = vld [vmem:[%s142 + $0x40] sm:$0xff]
        %v175 = vld [vmem:[%s142 + $0x48] sm:$0xff]
        %v176 = vld [vmem:[%s142 + $0x50] sm:$0xff]
        %v177 = vld [vmem:[%s142 + $0x58] sm:$0xff]
        %v178 = vld [vmem:[%s142 + $0x60] sm:$0xff]
        %v179 = vld [vmem:[%s142 + $0x68] sm:$0xff]
        %v180 = vld [vmem:[%s142 + $0x70] sm:$0xff]
        %v181 = vld [vmem:[%s142 + $0x78] sm:$0xff]
        %v182 = vld [vmem:[%s142 + $0x80] sm:$0xff]
        %v183 = vld [vmem:[%s142 + $0x88] sm:$0xff]
        %v184 = vld [vmem:[%s142 + $0x90] sm:$0xff]
        %v185 = vld [vmem:[%s142 + $0x98] sm:$0xff]
        %v186 = vld [vmem:[%s142 + $0xa0] sm:$0xff]
        %v187 = vld [vmem:[%s142 + $0xa8] sm:$0xff]
        %v188 = vld [vmem:[%s142 + $0xb0] sm:$0xff]
        %v189 = vld [vmem:[%s142 + $0xb8] sm:$0xff]
        %v190 = vld [vmem:[%s142 + $0xc0] sm:$0xff]
        %v191 = vld [vmem:[%s142 + $0xc8] sm:$0xff]
        %v192 = vld [vmem:[%s142 + $0xd0] sm:$0xff]
        %v193 = vld [vmem:[%s142 + $0xd8] sm:$0xff]
        %v194 = vld [vmem:[%s142 + $0xe0] sm:$0xff]
        %v195 = vld [vmem:[%s142 + $0xe8] sm:$0xff]
        %v196 = vld [vmem:[%s142 + $0xf0] sm:$0xff]
        %v197 = vld [vmem:[%s142 + $0xf8] sm:$0xff]
        %v198 = vld [vmem:[%s142 + $0x100] sm:$0xff]
        %v199 = vld [vmem:[%s142 + $0x108] sm:$0xff]
        %v200 = vld [vmem:[%s142 + $0x110] sm:$0xff]
        %v201 = vld [vmem:[%s142 + $0x118] sm:$0xff]
        %v202 = vld [vmem:[%s142 + $0x120] sm:$0xff]
        %v203 = vld [vmem:[%s142 + $0x128] sm:$0xff]
        %v204 = vld [vmem:[%s142 + $0x130] sm:$0xff]
        %v205 = vld [vmem:[%s142 + $0x138] sm:$0xff]
        %v206 = vld [vmem:[%s142 + $0x140] sm:$0xff]
        %v207 = vld [vmem:[%s142 + $0x148] sm:$0xff]
        %v208 = vld [vmem:[%s142 + $0x150] sm:$0xff]
        %v209 = vld [vmem:[%s142 + $0x158] sm:$0xff]
        %v210 = vld [vmem:[%s142 + $0x160] sm:$0xff]
        %v211 = vld [vmem:[%s142 + $0x168] sm:$0xff]
        %v212 = vld [vmem:[%s142 + $0x170] sm:$0xff]
        %v213 = vld [vmem:[%s142 + $0x178] sm:$0xff]
        %v214 = vld [vmem:[%s142 + $0x180] sm:$0xff]
        %v215 = vld [vmem:[%s142 + $0x188] sm:$0xff]
        %v216 = vld [vmem:[%s142 + $0x190] sm:$0xff]
        %v217 = vld [vmem:[%s142 + $0x198] sm:$0xff]
        %v218 = vld [vmem:[%s142 + $0x1a0] sm:$0xff]
        %v219 = vld [vmem:[%s142 + $0x1a8] sm:$0xff]
        %v220 = vld [vmem:[%s142 + $0x1b0] sm:$0xff]
        %v221 = vld [vmem:[%s142 + $0x1b8] sm:$0xff]
        %v222 = vld [vmem:[%s142 + $0x1c0] sm:$0xff]
        %v223 = vld [vmem:[%s142 + $0x1c8] sm:$0xff]
        %v224 = vld [vmem:[%s142 + $0x1d0] sm:$0xff]
        %v225 = vld [vmem:[%s142 + $0x1d8] sm:$0xff]
        %v226 = vld [vmem:[%s142 + $0x1e0] sm:$0xff]
        %v227 = vld [vmem:[%s142 + $0x1e8] sm:$0xff]
        %v228 = vld [vmem:[%s142 + $0x1f0] sm:$0xff]
        %v229 = vld [vmem:[%s142 + $0x1f8] sm:$0xff]
        %v230 = vld [vmem:[%s142 + $0x200] sm:$0xff]
        %v231 = vld [vmem:[%s142 + $0x208] sm:$0xff]
        %v232 = vld [vmem:[%s142 + $0x210] sm:$0xff]
        %v233 = vld [vmem:[%s142 + $0x218] sm:$0xff]
        %v234 = vld [vmem:[%s142 + $0x220] sm:$0xff]
        %v235 = vld [vmem:[%s142 + $0x228] sm:$0xff]
        %v236 = vld [vmem:[%s142 + $0x230] sm:$0xff]
        %v237 = vld [vmem:[%s142 + $0x238] sm:$0xff]
        %v238 = vld [vmem:[%s142 + $0x240] sm:$0xff]
        %v239 = vld [vmem:[%s142 + $0x248] sm:$0xff]
        %v240 = vld [vmem:[%s142 + $0x250] sm:$0xff]
        %v241 = vld [vmem:[%s142 + $0x258] sm:$0xff]
        %v242 = vld [vmem:[%s142 + $0x260] sm:$0xff]
        %v243 = vld [vmem:[%s142 + $0x268] sm:$0xff]
        %v244 = vld [vmem:[%s142 + $0x270] sm:$0xff]
        %v245 = vld [vmem:[%s142 + $0x278] sm:$0xff]
        %v246 = vld [vmem:[%s142 + $0x280] sm:$0xff]
        %v247 = vld [vmem:[%s142 + $0x288] sm:$0xff]
        %v248 = vld [vmem:[%s142 + $0x290] sm:$0xff]
        %v249 = vld [vmem:[%s142 + $0x298] sm:$0xff]
        %v250 = vld [vmem:[%s142 + $0x2a0] sm:$0xff]
        %v251 = vld [vmem:[%s142 + $0x2a8] sm:$0xff]
        %v252 = vld [vmem:[%s142 + $0x2b0] sm:$0xff]
        %v253 = vld [vmem:[%s142 + $0x2b8] sm:$0xff]
        %v254 = vld [vmem:[%s142 + $0x2c0] sm:$0xff]
        %v255 = vld [vmem:[%s142 + $0x2c8] sm:$0xff]
        %v256 = vld [vmem:[%s142 + $0x2d0] sm:$0xff]
        %v257 = vld [vmem:[%s142 + $0x2d8] sm:$0xff]
        %v258 = vld [vmem:[%s142 + $0x2e0] sm:$0xff]
        %v259 = vld [vmem:[%s142 + $0x2e8] sm:$0xff]
        %v260 = vld [vmem:[%s142 + $0x2f0] sm:$0xff]
        %v261 = vld [vmem:[%s142 + $0x2f8] sm:$0xff]
        %v262 = vld [vmem:[%s142 + $0x300] sm:$0xff]
        %v263 = vld [vmem:[%s142 + $0x308] sm:$0xff]
        %v264 = vld [vmem:[%s142 + $0x310] sm:$0xff]
        %v265 = vld [vmem:[%s142 + $0x318] sm:$0xff]
        %s266 = scalar_lea.vmem %s1, %s165
        %v267 = vld [vmem:[%s266] sm:$0xff]
        %v268 = vld [vmem:[%s266 + $0x8] sm:$0xff]
        %v269 = vld [vmem:[%s266 + $0x10] sm:$0xff]
        %v270 = vld [vmem:[%s266 + $0x18] sm:$0xff]
        %272 = vset.pattern.permute.xlu0 0
        %273 = vperm.xlu0 %272, %v267
        %v274 = vpop.permute.xlu0 %273
        %277 = vset.pattern.permute.xlu0 0
        %278 = vperm.xlu0 %277, %v268
        %v279 = vpop.permute.xlu0 %278
        %282 = vset.pattern.permute.xlu0 0
        %283 = vperm.xlu0 %282, %v269
        %v284 = vpop.permute.xlu0 %283
        %287 = vset.pattern.permute.xlu0 0
        %288 = vperm.xlu0 %287, %v270
        %v289 = vpop.permute.xlu0 %288
        %v291 = vmul.f32 %v166, %v274
        %v292 = vmul.f32 %v167, %v274
        %v293 = vmul.f32 %v168, %v274
        %v294 = vmul.f32 %v169, %v274
        %v295 = vmul.f32 %v170, %v274
        %v296 = vmul.f32 %v171, %v274
        %v297 = vmul.f32 %v172, %v274
        %v298 = vmul.f32 %v173, %v274
        %v299 = vmul.f32 %v174, %v274
        %v300 = vmul.f32 %v175, %v274
        %v301 = vmul.f32 %v176, %v274
        %v302 = vmul.f32 %v177, %v274
        %v303 = vmul.f32 %v178, %v274
        %v304 = vmul.f32 %v179, %v274
        %v305 = vmul.f32 %v180, %v274
        %v306 = vmul.f32 %v181, %v274
        %v307 = vmul.f32 %v182, %v274
        %v308 = vmul.f32 %v183, %v274
        %v309 = vmul.f32 %v184, %v274
        %v310 = vmul.f32 %v185, %v274
        %v311 = vmul.f32 %v186, %v274
        %v312 = vmul.f32 %v187, %v274
        %v313 = vmul.f32 %v188, %v274
        %v314 = vmul.f32 %v189, %v274
        %v315 = vmul.f32 %v190, %v274
        %v316 = vmul.f32 %v191, %v279
        %v317 = vmul.f32 %v192, %v279
        %v318 = vmul.f32 %v193, %v279
        %v319 = vmul.f32 %v194, %v279
        %v320 = vmul.f32 %v195, %v279
        %v321 = vmul.f32 %v196, %v279
        %v322 = vmul.f32 %v197, %v279
        %v323 = vmul.f32 %v198, %v279
        %v324 = vmul.f32 %v199, %v279
        %v325 = vmul.f32 %v200, %v279
        %v326 = vmul.f32 %v201, %v279
        %v327 = vmul.f32 %v202, %v279
        %v328 = vmul.f32 %v203, %v279
        %v329 = vmul.f32 %v204, %v279
        %v330 = vmul.f32 %v205, %v279
        %v331 = vmul.f32 %v206, %v279
        %v332 = vmul.f32 %v207, %v279
        %v333 = vmul.f32 %v208, %v279
        %v334 = vmul.f32 %v209, %v279
        %v335 = vmul.f32 %v210, %v279
        %v336 = vmul.f32 %v211, %v279
        %v337 = vmul.f32 %v212, %v279
        %v338 = vmul.f32 %v213, %v279
        %v339 = vmul.f32 %v214, %v279
        %v340 = vmul.f32 %v215, %v279
        %v341 = vmul.f32 %v216, %v284
        %v342 = vmul.f32 %v217, %v284
        %v343 = vmul.f32 %v218, %v284
        %v344 = vmul.f32 %v219, %v284
        %v345 = vmul.f32 %v220, %v284
        %v346 = vmul.f32 %v221, %v284
        %v347 = vmul.f32 %v222, %v284
        %v348 = vmul.f32 %v223, %v284
        %v349 = vmul.f32 %v224, %v284
        %v350 = vmul.f32 %v225, %v284
        %v351 = vmul.f32 %v226, %v284
        %v352 = vmul.f32 %v227, %v284
        %v353 = vmul.f32 %v228, %v284
        %v354 = vmul.f32 %v229, %v284
        %v355 = vmul.f32 %v230, %v284
        %v356 = vmul.f32 %v231, %v284
        %v357 = vmul.f32 %v232, %v284
        %v358 = vmul.f32 %v233, %v284
        %v359 = vmul.f32 %v234, %v284
        %v360 = vmul.f32 %v235, %v284
        %v361 = vmul.f32 %v236, %v284
        %v362 = vmul.f32 %v237, %v284
        %v363 = vmul.f32 %v238, %v284
        %v364 = vmul.f32 %v239, %v284
        %v365 = vmul.f32 %v240, %v284
        %v366 = vmul.f32 %v241, %v289
        %v367 = vmul.f32 %v242, %v289
        %v368 = vmul.f32 %v243, %v289
        %v369 = vmul.f32 %v244, %v289
        %v370 = vmul.f32 %v245, %v289
        %v371 = vmul.f32 %v246, %v289
        %v372 = vmul.f32 %v247, %v289
        %v373 = vmul.f32 %v248, %v289
        %v374 = vmul.f32 %v249, %v289
        %v375 = vmul.f32 %v250, %v289
        %v376 = vmul.f32 %v251, %v289
        %v377 = vmul.f32 %v252, %v289
        %v378 = vmul.f32 %v253, %v289
        %v379 = vmul.f32 %v254, %v289
        %v380 = vmul.f32 %v255, %v289
        %v381 = vmul.f32 %v256, %v289
        %v382 = vmul.f32 %v257, %v289
        %v383 = vmul.f32 %v258, %v289
        %v384 = vmul.f32 %v259, %v289
        %v385 = vmul.f32 %v260, %v289
        %v386 = vmul.f32 %v261, %v289
        %v387 = vmul.f32 %v262, %v289
        %v388 = vmul.f32 %v263, %v289
        %v389 = vmul.f32 %v264, %v289
        %v390 = vmul.f32 %v265, %v289
        %391 = vst [vmem:[%s162] sm:$0xff] %v291
        %392 = vst [vmem:[%s162 + $0x8] sm:$0xff] %v292
        %393 = vst [vmem:[%s162 + $0x10] sm:$0xff] %v293
        %394 = vst [vmem:[%s162 + $0x18] sm:$0xff] %v294
        %395 = vst [vmem:[%s162 + $0x20] sm:$0xff] %v295
        %396 = vst [vmem:[%s162 + $0x28] sm:$0xff] %v296
        %397 = vst [vmem:[%s162 + $0x30] sm:$0xff] %v297
        %398 = vst [vmem:[%s162 + $0x38] sm:$0xff] %v298
        %399 = vst [vmem:[%s162 + $0x40] sm:$0xff] %v299
        %400 = vst [vmem:[%s162 + $0x48] sm:$0xff] %v300
        %401 = vst [vmem:[%s162 + $0x50] sm:$0xff] %v301
        %402 = vst [vmem:[%s162 + $0x58] sm:$0xff] %v302
        %403 = vst [vmem:[%s162 + $0x60] sm:$0xff] %v303
        %404 = vst [vmem:[%s162 + $0x68] sm:$0xff] %v304
        %405 = vst [vmem:[%s162 + $0x70] sm:$0xff] %v305
        %406 = vst [vmem:[%s162 + $0x78] sm:$0xff] %v306
        %407 = vst [vmem:[%s162 + $0x80] sm:$0xff] %v307
        %408 = vst [vmem:[%s162 + $0x88] sm:$0xff] %v308
        %409 = vst [vmem:[%s162 + $0x90] sm:$0xff] %v309
        %410 = vst [vmem:[%s162 + $0x98] sm:$0xff] %v310
        %411 = vst [vmem:[%s162 + $0xa0] sm:$0xff] %v311
        %412 = vst [vmem:[%s162 + $0xa8] sm:$0xff] %v312
        %413 = vst [vmem:[%s162 + $0xb0] sm:$0xff] %v313
        %414 = vst [vmem:[%s162 + $0xb8] sm:$0xff] %v314
        %vm415 = vcmask 523264
        %416 = vst.msk [vmem:[%s162 + $0xc0] sm:$0xff] %vm415, %v315
        %417 = vst [vmem:[%s162 + $0xc8] sm:$0xff] %v316
        %418 = vst [vmem:[%s162 + $0xd0] sm:$0xff] %v317
        %419 = vst [vmem:[%s162 + $0xd8] sm:$0xff] %v318
        %420 = vst [vmem:[%s162 + $0xe0] sm:$0xff] %v319
        %421 = vst [vmem:[%s162 + $0xe8] sm:$0xff] %v320
        %422 = vst [vmem:[%s162 + $0xf0] sm:$0xff] %v321
        %423 = vst [vmem:[%s162 + $0xf8] sm:$0xff] %v322
        %424 = vst [vmem:[%s162 + $0x100] sm:$0xff] %v323
        %425 = vst [vmem:[%s162 + $0x108] sm:$0xff] %v324
        %426 = vst [vmem:[%s162 + $0x110] sm:$0xff] %v325
        %427 = vst [vmem:[%s162 + $0x118] sm:$0xff] %v326
        %428 = vst [vmem:[%s162 + $0x120] sm:$0xff] %v327
        %429 = vst [vmem:[%s162 + $0x128] sm:$0xff] %v328
        %430 = vst [vmem:[%s162 + $0x130] sm:$0xff] %v329
        %431 = vst [vmem:[%s162 + $0x138] sm:$0xff] %v330
        %432 = vst [vmem:[%s162 + $0x140] sm:$0xff] %v331
        %433 = vst [vmem:[%s162 + $0x148] sm:$0xff] %v332
        %434 = vst [vmem:[%s162 + $0x150] sm:$0xff] %v333
        %435 = vst [vmem:[%s162 + $0x158] sm:$0xff] %v334
        %436 = vst [vmem:[%s162 + $0x160] sm:$0xff] %v335
        %437 = vst [vmem:[%s162 + $0x168] sm:$0xff] %v336
        %438 = vst [vmem:[%s162 + $0x170] sm:$0xff] %v337
        %439 = vst [vmem:[%s162 + $0x178] sm:$0xff] %v338
        %440 = vst [vmem:[%s162 + $0x180] sm:$0xff] %v339
        %441 = vst.msk [vmem:[%s162 + $0x188] sm:$0xff] %vm415, %v340
        %442 = vst [vmem:[%s162 + $0x190] sm:$0xff] %v341
        %443 = vst [vmem:[%s162 + $0x198] sm:$0xff] %v342
        %444 = vst [vmem:[%s162 + $0x1a0] sm:$0xff] %v343
        %445 = vst [vmem:[%s162 + $0x1a8] sm:$0xff] %v344
        %446 = vst [vmem:[%s162 + $0x1b0] sm:$0xff] %v345
        %447 = vst [vmem:[%s162 + $0x1b8] sm:$0xff] %v346
        %448 = vst [vmem:[%s162 + $0x1c0] sm:$0xff] %v347
        %449 = vst [vmem:[%s162 + $0x1c8] sm:$0xff] %v348
        %450 = vst [vmem:[%s162 + $0x1d0] sm:$0xff] %v349
        %451 = vst [vmem:[%s162 + $0x1d8] sm:$0xff] %v350
        %452 = vst [vmem:[%s162 + $0x1e0] sm:$0xff] %v351
        %453 = vst [vmem:[%s162 + $0x1e8] sm:$0xff] %v352
        %454 = vst [vmem:[%s162 + $0x1f0] sm:$0xff] %v353
        %455 = vst [vmem:[%s162 + $0x1f8] sm:$0xff] %v354
        %456 = vst [vmem:[%s162 + $0x200] sm:$0xff] %v355
        %457 = vst [vmem:[%s162 + $0x208] sm:$0xff] %v356
        %458 = vst [vmem:[%s162 + $0x210] sm:$0xff] %v357
        %459 = vst [vmem:[%s162 + $0x218] sm:$0xff] %v358
        %460 = vst [vmem:[%s162 + $0x220] sm:$0xff] %v359
        %461 = vst [vmem:[%s162 + $0x228] sm:$0xff] %v360
        %462 = vst [vmem:[%s162 + $0x230] sm:$0xff] %v361
        %463 = vst [vmem:[%s162 + $0x238] sm:$0xff] %v362
        %464 = vst [vmem:[%s162 + $0x240] sm:$0xff] %v363
        %465 = vst [vmem:[%s162 + $0x248] sm:$0xff] %v364
        %466 = vst.msk [vmem:[%s162 + $0x250] sm:$0xff] %vm415, %v365
        %467 = vst [vmem:[%s162 + $0x258] sm:$0xff] %v366
        %468 = vst [vmem:[%s162 + $0x260] sm:$0xff] %v367
        %469 = vst [vmem:[%s162 + $0x268] sm:$0xff] %v368
        %470 = vst [vmem:[%s162 + $0x270] sm:$0xff] %v369
        %471 = vst [vmem:[%s162 + $0x278] sm:$0xff] %v370
        %472 = vst [vmem:[%s162 + $0x280] sm:$0xff] %v371
        %473 = vst [vmem:[%s162 + $0x288] sm:$0xff] %v372
        %474 = vst [vmem:[%s162 + $0x290] sm:$0xff] %v373
        %475 = vst [vmem:[%s162 + $0x298] sm:$0xff] %v374
        %476 = vst [vmem:[%s162 + $0x2a0] sm:$0xff] %v375
        %477 = vst [vmem:[%s162 + $0x2a8] sm:$0xff] %v376
        %478 = vst [vmem:[%s162 + $0x2b0] sm:$0xff] %v377
        %479 = vst [vmem:[%s162 + $0x2b8] sm:$0xff] %v378
        %480 = vst [vmem:[%s162 + $0x2c0] sm:$0xff] %v379
        %481 = vst [vmem:[%s162 + $0x2c8] sm:$0xff] %v380
        %482 = vst [vmem:[%s162 + $0x2d0] sm:$0xff] %v381
        %483 = vst [vmem:[%s162 + $0x2d8] sm:$0xff] %v382
        %484 = vst [vmem:[%s162 + $0x2e0] sm:$0xff] %v383
        %485 = vst [vmem:[%s162 + $0x2e8] sm:$0xff] %v384
        %486 = vst [vmem:[%s162 + $0x2f0] sm:$0xff] %v385
        %487 = vst [vmem:[%s162 + $0x2f8] sm:$0xff] %v386
        %488 = vst [vmem:[%s162 + $0x300] sm:$0xff] %v387
        %489 = vst [vmem:[%s162 + $0x308] sm:$0xff] %v388
        %490 = vst [vmem:[%s162 + $0x310] sm:$0xff] %v389
        %491 = vst.msk [vmem:[%s162 + $0x318] sm:$0xff] %vm415, %v390
        %s492 = sand.u32 %s74, 1
        %s493 = scalar_lea.sflag [#allocation4], %s492
        %s494 = sand.u32 %s74, 1
        %s495 = smul.addr %s494, 800
        %s496 = scalar_lea.vmem [#allocation5], %s495
        // Predicated region
        $region33: #{tpu_custom_call.1} parent=27 // pred_check
          %p497 = pneg %p84
        $region34: #{tpu_custom_call.1} parent=27 // pred_check_branch
          %499 = sbr.rel (%p497) target = $region36
        $region35: #{tpu_custom_call.1} parent=27 // pred_region
          %s500 = smul.u32 4, %s19
          %s502 = ssub.s32 12800, 12800
          %503 = vsyncadd %s493, %s502
          %s504 = smul.addr %s500, 25
          %s505 = smul.addr %s504, 128
          %s506 = scalar_lea.hbm %s2, %s505
          %s507 = sshll.u32 %s496, 4
          %s508 = int_to_ptr.vmem [resolvable:$true] %s507
          %513 = dma.vmem_to_hbm [thread:$0]  %s508, 12800, %s506, %s493, 3200, 3200, 200
        $region36: #{tpu_custom_call.1} parent=27 // pred_fallthru
          _
      $region28: #{tpu_custom_call.1} parent=5 // pred_fallthru
        _
      %p514 = scmp.le.s32.totalorder 2, %s14
      // Predicated region
      $region37: #{tpu_custom_call.1} parent=5 // pred_check
        %p515 = pneg %p514
      $region38: #{tpu_custom_call.1} parent=5 // pred_check_branch
        %517 = sbr.rel (%p515) target = $region40
      $region39: #{tpu_custom_call.1} parent=5 // pred_region
        %s518 = ssub.s32 %s14, 2
        // Predicated region
        $region41: #{tpu_custom_call.1} parent=39 // pred_check
          %p519 = pneg %p90
        $region42: #{tpu_custom_call.1} parent=39 // pred_check_branch
          %521 = sbr.rel (%p519) target = $region44
        $region43: #{tpu_custom_call.1} parent=39 // pred_region
          %s522 = sand.u32 %s75, 1
          %s523 = scalar_lea.sflag [#allocation4], %s522
          %s524 = sand.u32 %s75, 1
          %s525 = smul.addr %s524, 800
          %s526 = scalar_lea.vmem [#allocation5], %s525
          %527 = dma.done %s523, 12800
        $region44: #{tpu_custom_call.1} parent=39 // pred_fallthru
          _
      $region40: #{tpu_custom_call.1} parent=5 // pred_fallthru
        _
    $region6: #{tpu_custom_call.1} parent=1 // loop_footer
      %s18 = sadd.s32 1, %s14
    $region7: #{tpu_custom_call.1} parent=1 // loop_footer_branch
      %13 = sbr.rel target = $region3
    $region8: #{tpu_custom_call.1} parent=1 // loop_exit
      _
    %528 = vsyncpa [#allocation3], 1
    %s529 = scalar_lea.sflag [#allocation3], 1
    %530 = vsyncpa %s529, 1
    %531 = vsyncpa [#allocation4], 1
    %s532 = scalar_lea.sflag [#allocation4], 1
    %533 = vsyncpa %s532, 1

</llo_original>
